<compile_context>
chip_gen: v7x
topology: tpu7x:2x2x1
jax: 0.10.0
libtpu: 0.0.40
codegen_flags: <defaults>
</compile_context>

<pallas_src>
import jax
import jax.numpy as jnp
from jax import lax
from jax.experimental import pallas as pl
from jax.experimental.pallas import tpu as pltpu


def gating_kernel(x_ref, y_ref, w_re_ref, bb_ref, wq_ref, wk_ref, o_ref):
    TB, N, H = o_ref.shape
    C = wq_ref.shape[0]
    hd = C // H

    # ---- linear_re: Linear(7C -> C), bf16 operands, f32 accumulation ----
    h = jnp.dot(x_ref[...], w_re_ref[...],
                preferred_element_type=jnp.float32)               # (TB, C) f32
    h = h + bb_ref[0:1, :]                                        # bias (f32)
    h = h * jax.nn.sigmoid(1.702 * h)                             # QuickGELU (f32)
    h = h * bb_ref[1:2, :] + bb_ref[2:3, :]                       # BatchNorm1d (eval)

    # ---- q projection (softmax scale pre-folded into wq) ----
    q = jnp.dot(h.astype(jnp.bfloat16), wq_ref[...],
                preferred_element_type=jnp.float32)               # (TB, C) f32

    # ---- k projection: one large (TB*N, C) @ (C, C) matmul ----
    k2 = jnp.dot(y_ref[...], wk_ref[...],
                 preferred_element_type=jnp.float32)              # (TB*N, C) f32

    # ---- head contraction: VPU product + ONE (TB*N, C) @ (C, H) matmul ----
    p = k2.reshape(TB, N, C) * q[:, None, :]                      # (TB, N, C) f32
    c_idx = lax.broadcasted_iota(jnp.int32, (C, H), 0)
    h_lo = lax.broadcasted_iota(jnp.int32, (C, H), 1) * hd
    emask_t = ((c_idx >= h_lo) & (c_idx < h_lo + hd)).astype(jnp.float32)  # (C, H)
    attn = jnp.dot(p.reshape(TB * N, C), emask_t,
                   preferred_element_type=jnp.float32)            # (TB*N, H) f32
    attn = attn.reshape(TB, N, H)

    # ---- softmax over keys (axis=1), f32, EUP reciprocal ----
    attn = attn - jnp.max(attn, axis=1, keepdims=True)
    e = jnp.exp(attn)
    denom = jnp.sum(e, axis=1, keepdims=True)
    o_ref[...] = e * pl.reciprocal(denom, approx=True)            # (TB, N, H)


def _pick_batch_tile(B, N, C, H, cap):
    """VMEM-aware batch tile: fits double-buffered streams + resident weights +
    f32 intermediates under the device VMEM capacity (64 MiB fallback)."""
    try:
        vmem_bytes = int(pltpu.get_tpu_info().vmem_capacity_bytes)
    except Exception:
        vmem_bytes = 64 * 1024 * 1024          # conservative (v7x per-core)
    budget = int(vmem_bytes * 0.75)

    # Resident bf16 weights (double-buffered by the default pipeliner) + (3,C).
    weight_bytes = 2 * 2 * (7 * C * C + 2 * C * C) + 2 * 4 * 3 * C
    # Per batch row: x(bf16)/y(bf16)/out(f32) double-buffered + f32 intermediates.
    per_row = (2 * (2 * 7 * C) + 2 * (2 * N * C) + 2 * (4 * N * H)
               + 8 * N * C + 16 * C)

    avail = max(budget - weight_bytes, per_row)
    tb = max(1, avail // per_row)
    tb = min(tb, cap, B)

    if B < 8:
        tb = B                                  # block dim == full array dim
    elif tb < 8:
        tb = 8                                  # minimum sublane-aligned tile
    else:
        tb = (tb // 8) * 8
        # v7x megacore: keep >= 2 grid steps on the "parallel" batch axis.
        if B // tb < 2 and B >= 16:
            half = -(-B // 2)
            tb = min(tb, max(8, (half // 8) * 8))
    return tb, vmem_bytes


def gating_network_forward(x, y, params, num_heads, batch_tile=512):
    """Pallas implementation of GatingNetwork.forward(x, y) -> (B, H, 1, N)."""
    B, N, C = y.shape
    assert C % num_heads == 0, "dim must be divisible by num_heads"
    H = num_heads
    head_dim = C // H
    scale = head_dim ** -0.5
    eps = 1e-5

    # Eval-mode BatchNorm folded into scale/shift; packed with the linear_re
    # bias into a single resident (3, C) f32 operand.
    inv_std = 1.0 / jnp.sqrt(params["bn_var"] + eps)
    bn_scale = params["bn_gamma"] * inv_std
    bn_shift = params["bn_beta"] - params["bn_mean"] * bn_scale
    bias_bn = jnp.stack([params["b_re"], bn_scale, bn_shift], 0).astype(jnp.float32)

    # bf16 matmul operands (elementwise math stays f32 inside the kernel).
    x_bf = x.astype(jnp.bfloat16)
    y2_bf = y.reshape(B * N, C).astype(jnp.bfloat16)       # pre-flattened for the kernel
    w_re = params["w_re"].astype(jnp.bfloat16)
    wq = (params["wq"] * scale).astype(jnp.bfloat16)       # softmax scale folded in
    wk = params["wk"].astype(jnp.bfloat16)

    TB, vmem_bytes = _pick_batch_tile(B, N, C, H, batch_tile)
    grid = (pl.cdiv(B, TB),)
    const2 = lambda i: (0, 0)

    in_specs = [
        pl.BlockSpec((TB, 7 * C), lambda i: (i, 0)),       # x   (batch tiled, bf16)
        pl.BlockSpec((TB * N, C), lambda i: (i, 0)),       # y   (batch tiled, bf16)
        pl.BlockSpec((7 * C, C), const2),                  # w_re      (resident)
        pl.BlockSpec((3, C), const2),                      # bias/BN   (resident, f32)
        pl.BlockSpec((C, C), const2),                      # wq*scale  (resident)
        pl.BlockSpec((C, C), const2),                      # wk        (resident)
    ]
    out_specs = pl.BlockSpec((TB, N, H), lambda i: (i, 0, 0))

    flops = (2 * B * 7 * C * C            # linear_re
             + 2 * B * C * C              # q projection
             + 2 * B * N * C * C          # k projection
             + 2 * B * N * C * H)         # head-mask contraction
    transcendentals = B * C + B * N * H   # sigmoid + exp
    bytes_accessed = (2 * (x.size + y.size + 7 * C * C + 2 * C * C)
                      + 4 * 3 * C + 4 * B * N * H)
    cost = pl.CostEstimate(flops=flops, transcendentals=transcendentals,
                           bytes_accessed=bytes_accessed)

    gates_bnh = pl.pallas_call(
        gating_kernel,
        grid=grid,
        out_shape=jax.ShapeDtypeStruct((B, N, H), jnp.float32),
        in_specs=in_specs,
        out_specs=out_specs,
        compiler_params=pltpu.CompilerParams(
            dimension_semantics=("parallel",),
            vmem_limit_bytes=int(vmem_bytes * 0.85)),
        cost_estimate=cost,
    )(x_bf, y2_bf, w_re, bias_bn, wq, wk)

    # Tiny gate tensor: permute (B, N, H) -> (B, H, 1, N) outside the kernel.
    return jnp.transpose(gates_bnh, (0, 2, 1))[:, :, None, :]


def gating_network_ref(x, y, params, num_heads):
    """Pure-JAX reference mirroring the PyTorch forward (eval-mode BN)."""
    B, N, C = y.shape
    hd = C // num_heads
    eps = 1e-5
    h = x @ params["w_re"] + params["b_re"]
    h = h * jax.nn.sigmoid(1.702 * h)
    h = (h - params["bn_mean"]) / jnp.sqrt(params["bn_var"] + eps)
    h = h * params["bn_gamma"] + params["bn_beta"]
    q = h @ params["wq"]                                                # (B, C)
    k = y @ params["wk"]                                                # (B, N, C)
    qh = q.reshape(B, 1, num_heads, hd).transpose(0, 2, 1, 3)           # (B,H,1,hd)
    kh = k.reshape(B, N, num_heads, hd).transpose(0, 2, 1, 3)           # (B,H,N,hd)
    attn = jnp.einsum("bhqd,bhkd->bhqk", qh, kh) * (hd ** -0.5)
    return jax.nn.softmax(attn, axis=-1)                                # (B,H,1,N)


if __name__ == "__main__":
    B, N, C, H = 2, 8, 32, 4            # batch, seq (keys), dim, heads
    key = jax.random.PRNGKey(0)
    ks = jax.random.split(key, 10)

    x = jax.random.normal(ks[0], (B, 7 * C), jnp.float32)
    y = jax.random.normal(ks[1], (B, N, C), jnp.float32)

    params = {
        "w_re": jax.random.normal(ks[2], (7 * C, C), jnp.float32) * 0.05,
        "b_re": jax.random.normal(ks[3], (C,), jnp.float32) * 0.05,
        "bn_gamma": 1.0 + 0.1 * jax.random.normal(ks[4], (C,), jnp.float32),
        "bn_beta": 0.1 * jax.random.normal(ks[5], (C,), jnp.float32),
        "bn_mean": 0.1 * jax.random.normal(ks[6], (C,), jnp.float32),
        "bn_var": 1.0 + 0.1 * jax.random.uniform(ks[7], (C,), jnp.float32),
        "wq": jax.random.normal(ks[8], (C, C), jnp.float32) * 0.05,
        "wk": jax.random.normal(ks[9], (C, C), jnp.float32) * 0.05,
    }

    gates = gating_network_forward(x, y, params, num_heads=H)
    gates = jax.block_until_ready(gates)

    ref = gating_network_ref(x, y, params, num_heads=H)
    assert gates.shape == (B, H, 1, N), gates.shape
    # bf16 matmul operands + approx reciprocal -> relaxed tolerance.
    assert jnp.allclose(gates, ref, atol=5e-3, rtol=5e-3), \
        f"max abs diff {jnp.max(jnp.abs(gates - ref))}"

    print("KERNEL_OK")
</pallas_src>

<mosaic_0001>
module attributes {stable_mosaic.version = 11 : i64} {
  func.func @gating_kernel(%arg0: i32, %arg1: memref<2x224xbf16, #tpu.memory_space<vmem>>, %arg2: memref<16x32xbf16, #tpu.memory_space<vmem>>, %arg3: memref<224x32xbf16, #tpu.memory_space<vmem>>, %arg4: memref<3x32xf32, #tpu.memory_space<vmem>>, %arg5: memref<32x32xbf16, #tpu.memory_space<vmem>>, %arg6: memref<32x32xbf16, #tpu.memory_space<vmem>>, %arg7: memref<2x8x4xf32, #tpu.memory_space<vmem>>) attributes {dimension_semantics = [#tpu.dimension_semantics<parallel>], iteration_bounds = array<i64: 1>, scalar_prefetch = 0 : i64, scratch_operands = 0 : i64, tpu.core_type = #tpu.core_type<tc>, window_params = [{transform_indices = @transform_0, window_bounds = array<i64: 2, 224>}, {transform_indices = @transform_1, window_bounds = array<i64: 16, 32>}, {pipeline_mode = #tpu.pipeline_mode<synchronous>, transform_indices = @transform_2, window_bounds = array<i64: 224, 32>}, {pipeline_mode = #tpu.pipeline_mode<synchronous>, transform_indices = @transform_3, window_bounds = array<i64: 3, 32>}, {pipeline_mode = #tpu.pipeline_mode<synchronous>, transform_indices = @transform_4, window_bounds = array<i64: 32, 32>}, {pipeline_mode = #tpu.pipeline_mode<synchronous>, transform_indices = @transform_5, window_bounds = array<i64: 32, 32>}, {transform_indices = @transform_6, window_bounds = array<i64: 2, 8, 4>}]} {
    %c0 = arith.constant 0 : index
    %c0_0 = arith.constant 0 : index
    %0 = vector.load %arg1[%c0, %c0_0] : memref<2x224xbf16, #tpu.memory_space<vmem>>, vector<2x224xbf16>
    %c0_1 = arith.constant 0 : index
    %c0_2 = arith.constant 0 : index
    %1 = vector.load %arg3[%c0_1, %c0_2] : memref<224x32xbf16, #tpu.memory_space<vmem>>, vector<224x32xbf16>
    %cst = arith.constant dense<0.000000e+00> : vector<2x32xf32>
    %2 = tpu.matmul %0, %1, %cst {dimension_numbers = #tpu.dot_dimension_numbers<[1], [0], [0], [1], [0, 0, 1, 1], [], []>} : vector<2x224xbf16>, vector<224x32xbf16>, vector<2x32xf32> -> vector<2x32xf32>
    %c0_3 = arith.constant 0 : index
    %c0_4 = arith.constant 0 : index
    %3 = vector.load %arg4[%c0_3, %c0_4] : memref<3x32xf32, #tpu.memory_space<vmem>>, vector<1x32xf32>
    %4 = vector.broadcast %3 : vector<1x32xf32> to vector<2x32xf32>
    %5 = arith.addf %2, %4 : vector<2x32xf32>
    %cst_5 = arith.constant 1.702000e+00 : f32
    %6 = vector.broadcast %cst_5 : f32 to vector<2x32xf32>
    %7 = arith.mulf %6, %5 : vector<2x32xf32>
    %8 = arith.negf %7 : vector<2x32xf32>
    %9 = math.exp %8 : vector<2x32xf32>
    %cst_6 = arith.constant 1.000000e+00 : f32
    %10 = vector.broadcast %cst_6 : f32 to vector<2x32xf32>
    %11 = arith.addf %10, %9 : vector<2x32xf32>
    %12 = arith.divf %10, %11 : vector<2x32xf32>
    %13 = arith.mulf %5, %12 : vector<2x32xf32>
    %c1 = arith.constant 1 : index
    %c0_7 = arith.constant 0 : index
    %14 = vector.load %arg4[%c1, %c0_7] : memref<3x32xf32, #tpu.memory_space<vmem>>, vector<1x32xf32>
    %15 = vector.broadcast %14 : vector<1x32xf32> to vector<2x32xf32>
    %16 = arith.mulf %13, %15 : vector<2x32xf32>
    %c2 = arith.constant 2 : index
    %c0_8 = arith.constant 0 : index
    %17 = vector.load %arg4[%c2, %c0_8] : memref<3x32xf32, #tpu.memory_space<vmem>>, vector<1x32xf32>
    %18 = vector.broadcast %17 : vector<1x32xf32> to vector<2x32xf32>
    %19 = arith.addf %16, %18 : vector<2x32xf32>
    %20 = arith.truncf %19 : vector<2x32xf32> to vector<2x32xbf16>
    %c0_9 = arith.constant 0 : index
    %c0_10 = arith.constant 0 : index
    %21 = vector.load %arg5[%c0_9, %c0_10] : memref<32x32xbf16, #tpu.memory_space<vmem>>, vector<32x32xbf16>
    %cst_11 = arith.constant dense<0.000000e+00> : vector<2x32xf32>
    %22 = tpu.matmul %20, %21, %cst_11 {dimension_numbers = #tpu.dot_dimension_numbers<[1], [0], [0], [1], [0, 0, 1, 1], [], []>} : vector<2x32xbf16>, vector<32x32xbf16>, vector<2x32xf32> -> vector<2x32xf32>
    %c0_12 = arith.constant 0 : index
    %c0_13 = arith.constant 0 : index
    %23 = vector.load %arg2[%c0_12, %c0_13] : memref<16x32xbf16, #tpu.memory_space<vmem>>, vector<16x32xbf16>
    %c0_14 = arith.constant 0 : index
    %c0_15 = arith.constant 0 : index
    %24 = vector.load %arg6[%c0_14, %c0_15] : memref<32x32xbf16, #tpu.memory_space<vmem>>, vector<32x32xbf16>
    %cst_16 = arith.constant dense<0.000000e+00> : vector<16x32xf32>
    %25 = tpu.matmul %23, %24, %cst_16 {dimension_numbers = #tpu.dot_dimension_numbers<[1], [0], [0], [1], [0, 0, 1, 1], [], []>} : vector<16x32xbf16>, vector<32x32xbf16>, vector<16x32xf32> -> vector<16x32xf32>
    %26 = vector.shape_cast %25 : vector<16x32xf32> to vector<2x8x32xf32>
    %27 = vector.shape_cast %22 : vector<2x32xf32> to vector<2x1x32xf32>
    %28 = vector.broadcast %27 : vector<2x1x32xf32> to vector<2x8x32xf32>
    %29 = arith.mulf %26, %28 : vector<2x8x32xf32>
    %30 = tpu.iota {dimensions = array<i32: 0>} : vector<32x4xi32>
    %31 = tpu.iota {dimensions = array<i32: 1>} : vector<32x4xi32>
    %c8_i32 = arith.constant 8 : i32
    %32 = vector.broadcast %c8_i32 : i32 to vector<32x4xi32>
    %33 = arith.muli %31, %32 : vector<32x4xi32>
    %34 = arith.cmpi sge, %30, %33 : vector<32x4xi32>
    %c8_i32_17 = arith.constant 8 : i32
    %35 = vector.broadcast %c8_i32_17 : i32 to vector<32x4xi32>
    %36 = arith.addi %33, %35 : vector<32x4xi32>
    %37 = arith.cmpi slt, %30, %36 : vector<32x4xi32>
    %38 = arith.andi %34, %37 : vector<32x4xi1>
    %39 = arith.extui %38 : vector<32x4xi1> to vector<32x4xi32>
    %40 = arith.sitofp %39 : vector<32x4xi32> to vector<32x4xf32>
    %41 = vector.shape_cast %29 : vector<2x8x32xf32> to vector<16x32xf32>
    %cst_18 = arith.constant dense<0.000000e+00> : vector<16x4xf32>
    %42 = tpu.matmul %41, %40, %cst_18 {dimension_numbers = #tpu.dot_dimension_numbers<[1], [0], [0], [1], [0, 0, 1, 1], [], []>} : vector<16x32xf32>, vector<32x4xf32>, vector<16x4xf32> -> vector<16x4xf32>
    %43 = vector.shape_cast %42 : vector<16x4xf32> to vector<2x8x4xf32>
    %cst_19 = arith.constant dense<0xFF800000> : vector<2x4xf32>
    %44 = vector.multi_reduction <maximumf>, %43, %cst_19 [1] : vector<2x8x4xf32> to vector<2x4xf32>
    %45 = vector.shape_cast %44 : vector<2x4xf32> to vector<2x1x4xf32>
    %46 = vector.broadcast %45 : vector<2x1x4xf32> to vector<2x8x4xf32>
    %47 = arith.subf %43, %46 : vector<2x8x4xf32>
    %48 = math.exp %47 : vector<2x8x4xf32>
    %cst_20 = arith.constant dense<0.000000e+00> : vector<2x4xf32>
    %49 = vector.multi_reduction <add>, %48, %cst_20 [1] : vector<2x8x4xf32> to vector<2x4xf32>
    %50 = vector.shape_cast %49 : vector<2x4xf32> to vector<2x1x4xf32>
    %51 = tpu.reciprocal %50 {approx = true} : vector<2x1x4xf32> -> vector<2x1x4xf32>
    %52 = vector.broadcast %51 : vector<2x1x4xf32> to vector<2x8x4xf32>
    %53 = arith.mulf %48, %52 : vector<2x8x4xf32>
    %c0_21 = arith.constant 0 : index
    %c0_22 = arith.constant 0 : index
    %c0_23 = arith.constant 0 : index
    %54 = vector.load %arg7[%c0_21, %c0_22, %c0_23] : memref<2x8x4xf32, #tpu.memory_space<vmem>>, vector<2x8x4xf32>
    tpu.vector_store %arg7[%c0_21, %c0_22, %c0_23], %53 {strides = array<i32>} : memref<2x8x4xf32, #tpu.memory_space<vmem>>, vector<2x8x4xf32>,
    return
  }
  func.func @transform_0(%arg0: i32) -> (i32, i32) {
    %c0_i32 = arith.constant 0 : i32
    %c0_i32_0 = arith.constant 0 : i32
    return %arg0, %c0_i32 : i32, i32
  }
  func.func @transform_1(%arg0: i32) -> (i32, i32) {
    %c0_i32 = arith.constant 0 : i32
    %c0_i32_0 = arith.constant 0 : i32
    return %arg0, %c0_i32 : i32, i32
  }
  func.func @transform_2(%arg0: i32) -> (i32, i32) {
    %c0_i32 = arith.constant 0 : i32
    %c0_i32_0 = arith.constant 0 : i32
    %c0_i32_1 = arith.constant 0 : i32
    return %c0_i32, %c0_i32_0 : i32, i32
  }
  func.func @transform_3(%arg0: i32) -> (i32, i32) {
    %c0_i32 = arith.constant 0 : i32
    %c0_i32_0 = arith.constant 0 : i32
    %c0_i32_1 = arith.constant 0 : i32
    return %c0_i32, %c0_i32_0 : i32, i32
  }
  func.func @transform_4(%arg0: i32) -> (i32, i32) {
    %c0_i32 = arith.constant 0 : i32
    %c0_i32_0 = arith.constant 0 : i32
    %c0_i32_1 = arith.constant 0 : i32
    return %c0_i32, %c0_i32_0 : i32, i32
  }
  func.func @transform_5(%arg0: i32) -> (i32, i32) {
    %c0_i32 = arith.constant 0 : i32
    %c0_i32_0 = arith.constant 0 : i32
    %c0_i32_1 = arith.constant 0 : i32
    return %c0_i32, %c0_i32_0 : i32, i32
  }
  func.func @transform_6(%arg0: i32) -> (i32, i32, i32) {
    %c0_i32 = arith.constant 0 : i32
    %c0_i32_0 = arith.constant 0 : i32
    %c0_i32_1 = arith.constant 0 : i32
    return %arg0, %c0_i32, %c0_i32_0 : i32, i32, i32
  }
}

</mosaic_0001>

<llo_original>
// kernel: tpu_custom_call.1
$region0: #{tpu_custom_call.1}
  #allocation0 [shape = 'u32[]', space=smem, size = 0x4, offset = 0x4, fixed_abs, tag = 'smem constant byte address 0x4 - core index']
  #allocation1 [shape = 'u32[144,128]{1,0:T(1,128)}', space=vmem, size = 0x12000, scoped, tag = 'internal scratch']
  %s0 = inlined_call_operand.vmem [shape: bf16[2,224], index: 0, kind: input, shape index: {}]
  %s1 = inlined_call_operand.vmem [shape: bf16[16,32], index: 1, kind: input, shape index: {}]
  %s2 = inlined_call_operand.vmem [shape: bf16[224,32], index: 2, kind: input, shape index: {}]
  %s3 = inlined_call_operand.vmem [shape: f32[3,32], index: 3, kind: input, shape index: {}]
  %s4 = inlined_call_operand.vmem [shape: bf16[32,32], index: 4, kind: input, shape index: {}]
  %s5 = inlined_call_operand.vmem [shape: bf16[32,32], index: 5, kind: input, shape index: {}]
  %s6 = inlined_call_operand.vmem [shape: f32[2,8,4], index: 6, kind: output, shape index: {}]
  %s7 = sld [smem:[#allocation0]]
  $region34: #{tpu_custom_call.1} parent=0
    _
  %s9 = ssub.s32 1, %s7
  %s10 = scalar_select 0, %s9, %s7
  // Predicated region
  $region2: #{tpu_custom_call.1} parent=0 // pred_check
    _
  $region3: #{tpu_custom_call.1} parent=0 // pred_check_branch
    %12 = sbr.rel (0) target = $region5
  $region4: #{tpu_custom_call.1} parent=0 // pred_region
    _
  $region5: #{tpu_custom_call.1} parent=0 // pred_fallthru
    _
  // Predicated region
  $region6: #{tpu_custom_call.1} parent=0 // pred_check
    _
  $region7: #{tpu_custom_call.1} parent=0 // pred_check_branch
    %14 = sbr.rel (0) target = $region9
  $region8: #{tpu_custom_call.1} parent=0 // pred_region
    _
  $region9: #{tpu_custom_call.1} parent=0 // pred_fallthru
    _
  // Predicated region
  $region10: #{tpu_custom_call.1} parent=0 // pred_check
    _
  $region11: #{tpu_custom_call.1} parent=0 // pred_check_branch
    %16 = sbr.rel (0) target = $region13
  $region12: #{tpu_custom_call.1} parent=0 // pred_region
    _
  $region13: #{tpu_custom_call.1} parent=0 // pred_fallthru
    _
  // Predicated region
  $region14: #{tpu_custom_call.1} parent=0 // pred_check
    _
  $region15: #{tpu_custom_call.1} parent=0 // pred_check_branch
    %18 = sbr.rel (0) target = $region17
  $region16: #{tpu_custom_call.1} parent=0 // pred_region
    _
  $region17: #{tpu_custom_call.1} parent=0 // pred_fallthru
    _
  // Predicated region
  $region18: #{tpu_custom_call.1} parent=0 // pred_check
    _
  $region19: #{tpu_custom_call.1} parent=0 // pred_check_branch
    %20 = sbr.rel (0) target = $region21
  $region20: #{tpu_custom_call.1} parent=0 // pred_region
    _
  $region21: #{tpu_custom_call.1} parent=0 // pred_fallthru
    _
  // Predicated region
  $region22: #{tpu_custom_call.1} parent=0 // pred_check
    _
  $region23: #{tpu_custom_call.1} parent=0 // pred_check_branch
    %22 = sbr.rel (0) target = $region25
  $region24: #{tpu_custom_call.1} parent=0 // pred_region
    _
  $region25: #{tpu_custom_call.1} parent=0 // pred_fallthru
    _
  %v24 = vld [vmem:[%s0] sm:$0x3]
  %v25 = vld [vmem:[%s2] sm:$0xf]
  %v26 = vld [vmem:[%s2 + $0x4] sm:$0xf]
  %v27 = vld [vmem:[%s2 + $0x8] sm:$0xf]
  %v28 = vld [vmem:[%s2 + $0xc] sm:$0xf]
  %v29 = vld [vmem:[%s2 + $0x10] sm:$0xf]
  %v30 = vld [vmem:[%s2 + $0x14] sm:$0xf]
  %v31 = vld [vmem:[%s2 + $0x18] sm:$0xf]
  %v32 = vld [vmem:[%s2 + $0x1c] sm:$0xf]
  %v33 = vld [vmem:[%s2 + $0x20] sm:$0xf]
  %v34 = vld [vmem:[%s2 + $0x24] sm:$0xf]
  %v35 = vld [vmem:[%s2 + $0x28] sm:$0xf]
  %v36 = vld [vmem:[%s2 + $0x2c] sm:$0xf]
  %v37 = vld [vmem:[%s2 + $0x30] sm:$0xf]
  %v38 = vld [vmem:[%s2 + $0x34] sm:$0xf]
  %v39 = vld [vmem:[%s2 + $0x38] sm:$0xf]
  %v40 = vld [vmem:[%s2 + $0x3c] sm:$0xf]
  %v41 = vld [vmem:[%s2 + $0x40] sm:$0xf]
  %v42 = vld [vmem:[%s2 + $0x44] sm:$0xf]
  %v43 = vld [vmem:[%s2 + $0x48] sm:$0xf]
  %v44 = vld [vmem:[%s2 + $0x4c] sm:$0xf]
  %v45 = vld [vmem:[%s2 + $0x50] sm:$0xf]
  %v46 = vld [vmem:[%s2 + $0x54] sm:$0xf]
  %v47 = vld [vmem:[%s2 + $0x58] sm:$0xf]
  %v48 = vld [vmem:[%s2 + $0x5c] sm:$0xf]
  %v49 = vld [vmem:[%s2 + $0x60] sm:$0xf]
  %v50 = vld [vmem:[%s2 + $0x64] sm:$0xf]
  %v51 = vld [vmem:[%s2 + $0x68] sm:$0xf]
  %v52 = vld [vmem:[%s2 + $0x6c] sm:$0xf]
  %v53 = vld [vmem:[%s3] sm:$0x1]
  %v54 = vlaneseq
  %v55 = vshrl.u32 %v54, 7
  %v56 = vsub.s32 0, %v55
  %v57 = vrot.slane %v53, %v56
  %v60 = vunpack.c.l.s4 1966171168
  %v61 = vunpack.c.0.s8 %v60
  %v62 = vlaneseq
  %v63 = vshrl.u32 %v62, 7
  %v64 = vsub.s32 %v61, %v63
  %v65 = vrot.slane %v24, %v64
  %v66 = vcombine.high %v65, %v65
  %v68 = vunpack.c.l.s4 1966171168
  %v69 = vunpack.c.0.s8 %v68
  %v70 = vlaneseq
  %v71 = vshrl.u32 %v70, 7
  %v72 = vsub.s32 %v69, %v71
  %v73 = vrot.slane %v65, %v72
  %v75 = vunpack.c.l.s4 1966171168
  %v76 = vunpack.c.0.s8 %v75
  %v77 = vlaneseq
  %v78 = vshrl.u32 %v77, 7
  %v79 = vsub.s32 %v76, %v78
  %v80 = vrot.slane %v66, %v79
  %v110 = vunpack.c.l.b16 %v25
  %v111 = vunpack.c.l.b16 %v26
  %v112 = vunpack.c.l.b16 %v27
  %v113 = vunpack.c.l.b16 %v28
  %v114 = vunpack.c.l.b16 %v29
  %v115 = vunpack.c.l.b16 %v30
  %v116 = vunpack.c.l.b16 %v31
  %v117 = vunpack.c.l.b16 %v32
  %v118 = vunpack.c.l.b16 %v33
  %v119 = vunpack.c.l.b16 %v34
  %v120 = vunpack.c.l.b16 %v35
  %v121 = vunpack.c.l.b16 %v36
  %v122 = vunpack.c.l.b16 %v37
  %v123 = vunpack.c.l.b16 %v38
  %v124 = vunpack.c.l.b16 %v39
  %v125 = vunpack.c.l.b16 %v40
  %v126 = vunpack.c.l.b16 %v41
  %v127 = vunpack.c.l.b16 %v42
  %v128 = vunpack.c.l.b16 %v43
  %v129 = vunpack.c.l.b16 %v44
  %v130 = vunpack.c.l.b16 %v45
  %v131 = vunpack.c.l.b16 %v46
  %v132 = vunpack.c.l.b16 %v47
  %v133 = vunpack.c.l.b16 %v48
  %v134 = vunpack.c.l.b16 %v49
  %v135 = vunpack.c.l.b16 %v50
  %v136 = vunpack.c.l.b16 %v51
  %v137 = vunpack.c.l.b16 %v52
  %v138 = vpack.c.b16 %v111, %v110
  %v139 = vpack.c.b16 %v113, %v112
  %v140 = vpack.c.b16 %v115, %v114
  %v141 = vpack.c.b16 %v117, %v116
  %v142 = vpack.c.b16 %v119, %v118
  %v143 = vpack.c.b16 %v121, %v120
  %v144 = vpack.c.b16 %v123, %v122
  %v145 = vpack.c.b16 %v125, %v124
  %v146 = vpack.c.b16 %v127, %v126
  %v147 = vpack.c.b16 %v129, %v128
  %v148 = vpack.c.b16 %v131, %v130
  %v149 = vpack.c.b16 %v133, %v132
  %v150 = vpack.c.b16 %v135, %v134
  %v151 = vpack.c.b16 %v137, %v136
  %vm166 = vcmask 785408
  %v168 = vsel %vm166, %v80, 0
  %170 = vmatprep.subr.bf16.mxu0 0
  %171 = vmatpush1.bf16.msra.mxu0 %v138
  %172 = vmatprep.subr.bf16.mxu0 0
  %173 = vmatpush1.bf16.msra.mxu0 %v139
  %174 = vmatprep.subr.bf16.mxu0 0
  %175 = vmatpush1.bf16.msra.mxu0 %v140
  %176 = vmatprep.subr.bf16.mxu0 0
  %177 = vmatpush1.bf16.msra.mxu0 %v141
  %178 = vmatprep.subr.bf16.mxu0 0
  %179 = vmatpush1.bf16.msra.mxu0 %v142
  %180 = vmatprep.subr.bf16.mxu0 0
  %181 = vmatpush1.bf16.msra.mxu0 %v143
  %182 = vmatprep.subr.bf16.mxu0 0
  %183 = vmatpush1.bf16.msra.mxu0 %v144
  %184 = vmatprep.subr.bf16.mxu0 0
  %185 = vmatpush1.bf16.msra.mxu0 %v145
  %186 = vmatprep.subr.bf16.mxu0 0
  %187 = vmatpush1.bf16.msra.mxu0 %v146
  %188 = vmatprep.subr.bf16.mxu0 0
  %189 = vmatpush1.bf16.msra.mxu0 %v147
  %190 = vmatprep.subr.bf16.mxu0 0
  %191 = vmatpush1.bf16.msra.mxu0 %v148
  %192 = vmatprep.subr.bf16.mxu0 0
  %193 = vmatpush1.bf16.msra.mxu0 %v149
  %194 = vmatprep.subr.bf16.mxu0 0
  %195 = vmatpush1.bf16.msra.mxu0 %v150
  %196 = vmatprep.subr.bf16.mxu0 0
  %197 = vmatpush1.bf16.msra.mxu0 %v151
  %198 = vmatprep.subr.bf16.mxu0 0
  %199 = vmatpush1.bf16.msra.mxu0 0
  %200 = vmatprep.subr.bf16.mxu0 0
  %201 = vmatpush1.bf16.msra.mxu0 0
  %202 = vmatprep.mubr.bf16.mxu0 %v168
  %203 = vmatmul.mubr.bf16.gmra.mrb[0].mxu0 %v73
  %v204 = vpop.f32.mrb[0].mxu0
  %v205 = vadd.f32 %v57, %v204
  %v206 = vpop.f32.mrb[0].mxu0
  %v207 = vpop.f32.mrb[0].mxu0
  %v208 = vpop.f32.mrb[0].mxu0
  %209 = vdwg.mxu0
  %v210 = vmul.f32 %v205, 1.702
  %v211 = vxor.u32 %v210, 2147483648
  %v212 = vmul.f32 %v211, 1.442695
  %v213 = vpow.pop %v212
  %v214 = vadd.f32 %v213, 1.0
  %v215 = vrcp.pop %v214
  %v216 = vmul.f32 1.0, %v215
  %v217 = vmul.f32 %v205, %v216
  %v218 = vld [vmem:[%s3 + $0x1] sm:$0x1]
  %v219 = vlaneseq
  %v220 = vshrl.u32 %v219, 7
  %v221 = vsub.s32 0, %v220
  %v222 = vrot.slane %v218, %v221
  %v223 = vmul.f32 %v217, %v222
  %v224 = vld [vmem:[%s3 + $0x2] sm:$0x1]
  %v225 = vlaneseq
  %v226 = vshrl.u32 %v225, 7
  %v227 = vsub.s32 0, %v226
  %v228 = vrot.slane %v224, %v227
  %v229 = vadd.f32 %v223, %v228
  %v230 = vpack.c.bf16 %v229, %v229
  %v231 = vld [vmem:[%s4] sm:$0xf]
  %v232 = vld [vmem:[%s4 + $0x4] sm:$0xf]
  %v233 = vld [vmem:[%s4 + $0x8] sm:$0xf]
  %v234 = vld [vmem:[%s4 + $0xc] sm:$0xf]
  %v239 = vunpack.c.l.b16 %v231
  %v240 = vunpack.c.l.b16 %v232
  %v241 = vunpack.c.l.b16 %v233
  %v242 = vunpack.c.l.b16 %v234
  %v243 = vpack.c.b16 %v240, %v239
  %v244 = vpack.c.b16 %v242, %v241
  %vm247 = vcmask 261120
  %v249 = vsel %vm247, %v230, 0
  %251 = vmatprep.subr.bf16.mxu0 0
  %252 = vmatpush1.bf16.msra.mxu0 %v243
  %253 = vmatprep.subr.bf16.mxu0 0
  %254 = vmatpush1.bf16.msra.mxu0 %v244
  %255 = vmatprep.subr.bf16.mxu0 0
  %256 = vmatpush1.bf16.msra.mxu0 0
  %257 = vmatprep.subr.bf16.mxu0 0
  %258 = vmatpush1.bf16.msra.mxu0 0
  %259 = vmatprep.subr.bf16.mxu0 0
  %260 = vmatpush1.bf16.msra.mxu0 0
  %261 = vmatprep.subr.bf16.mxu0 0
  %262 = vmatpush1.bf16.msra.mxu0 0
  %263 = vmatprep.subr.bf16.mxu0 0
  %264 = vmatpush1.bf16.msra.mxu0 0
  %265 = vmatprep.subr.bf16.mxu0 0
  %266 = vmatpush1.bf16.msra.mxu0 0
  %267 = vmatprep.subr.bf16.mxu0 0
  %268 = vmatpush1.bf16.msra.mxu0 0
  %269 = vmatprep.subr.bf16.mxu0 0
  %270 = vmatpush1.bf16.msra.mxu0 0
  %271 = vmatprep.subr.bf16.mxu0 0
  %272 = vmatpush1.bf16.msra.mxu0 0
  %273 = vmatprep.subr.bf16.mxu0 0
  %274 = vmatpush1.bf16.msra.mxu0 0
  %275 = vmatprep.subr.bf16.mxu0 0
  %276 = vmatpush1.bf16.msra.mxu0 0
  %277 = vmatprep.subr.bf16.mxu0 0
  %278 = vmatpush1.bf16.msra.mxu0 0
  %279 = vmatprep.subr.bf16.mxu0 0
  %280 = vmatpush1.bf16.msra.mxu0 0
  %281 = vmatprep.subr.bf16.mxu0 0
  %282 = vmatpush1.bf16.msra.mxu0 0
  %283 = vmatprep.mubr.bf16.mxu0 0
  %284 = vmatmul.mubr.bf16.gmra.mrb[0].mxu0 %v249
  %v285 = vpop.f32.mrb[0].mxu0
  %v286 = vadd.f32 0.0, %v285
  %v287 = vpop.f32.mrb[0].mxu0
  %v288 = vpop.f32.mrb[0].mxu0
  %v289 = vpop.f32.mrb[0].mxu0
  %290 = vdwg.mxu0
  %v291 = vld [vmem:[%s1] sm:$0xf]
  %v292 = vld [vmem:[%s1 + $0x4] sm:$0xf]
  %v293 = vld [vmem:[%s5] sm:$0xf]
  %v294 = vld [vmem:[%s5 + $0x4] sm:$0xf]
  %v295 = vld [vmem:[%s5 + $0x8] sm:$0xf]
  %v296 = vld [vmem:[%s5 + $0xc] sm:$0xf]
  %v299 = vunpack.c.l.b16 %v291
  %v300 = vunpack.c.l.b16 %v292
  %v301 = vpack.c.b16 %v300, %v299
  %v306 = vunpack.c.l.b16 %v293
  %v307 = vunpack.c.l.b16 %v294
  %v308 = vunpack.c.l.b16 %v295
  %v309 = vunpack.c.l.b16 %v296
  %v310 = vpack.c.b16 %v307, %v306
  %v311 = vpack.c.b16 %v309, %v308
  %v315 = vsel %vm247, %v301, 0
  %317 = vmatprep.subr.bf16.mxu0 0
  %318 = vmatpush1.bf16.msra.mxu0 %v310
  %319 = vmatprep.subr.bf16.mxu0 0
  %320 = vmatpush1.bf16.msra.mxu0 %v311
  %321 = vmatprep.subr.bf16.mxu0 0
  %322 = vmatpush1.bf16.msra.mxu0 0
  %323 = vmatprep.subr.bf16.mxu0 0
  %324 = vmatpush1.bf16.msra.mxu0 0
  %325 = vmatprep.subr.bf16.mxu0 0
  %326 = vmatpush1.bf16.msra.mxu0 0
  %327 = vmatprep.subr.bf16.mxu0 0
  %328 = vmatpush1.bf16.msra.mxu0 0
  %329 = vmatprep.subr.bf16.mxu0 0
  %330 = vmatpush1.bf16.msra.mxu0 0
  %331 = vmatprep.subr.bf16.mxu0 0
  %332 = vmatpush1.bf16.msra.mxu0 0
  %333 = vmatprep.subr.bf16.mxu0 0
  %334 = vmatpush1.bf16.msra.mxu0 0
  %335 = vmatprep.subr.bf16.mxu0 0
  %336 = vmatpush1.bf16.msra.mxu0 0
  %337 = vmatprep.subr.bf16.mxu0 0
  %338 = vmatpush1.bf16.msra.mxu0 0
  %339 = vmatprep.subr.bf16.mxu0 0
  %340 = vmatpush1.bf16.msra.mxu0 0
  %341 = vmatprep.subr.bf16.mxu0 0
  %342 = vmatpush1.bf16.msra.mxu0 0
  %343 = vmatprep.subr.bf16.mxu0 0
  %344 = vmatpush1.bf16.msra.mxu0 0
  %345 = vmatprep.subr.bf16.mxu0 0
  %346 = vmatpush1.bf16.msra.mxu0 0
  %347 = vmatprep.subr.bf16.mxu0 0
  %348 = vmatpush1.bf16.msra.mxu0 0
  %349 = vmatprep.mubr.bf16.mxu0 0
  %350 = vmatmul.mubr.bf16.gmra.mrb[0].mxu0 %v315
  %v351 = vpop.f32.mrb[0].mxu0
  %v352 = vadd.f32 0.0, %v351
  %v353 = vpop.f32.mrb[0].mxu0
  %v354 = vpop.f32.mrb[0].mxu0
  %v355 = vadd.f32 0.0, %v354
  %v356 = vpop.f32.mrb[0].mxu0
  %357 = vdwg.mxu0
  %v360 = vunpack.c.l.s4 1966171168
  %v361 = vunpack.c.0.s8 %v360
  %v362 = vlaneseq
  %v363 = vshrl.u32 %v362, 7
  %v364 = vsub.s32 %v361, %v363
  %v365 = vrot.slane %v286, %v364
  %v366 = vcombine.high %v365, %v365
  %v368 = vunpack.c.l.s4 1966171168
  %v369 = vunpack.c.0.s8 %v368
  %v370 = vlaneseq
  %v371 = vshrl.u32 %v370, 7
  %v372 = vsub.s32 %v369, %v371
  %v373 = vrot.slane %v365, %v372
  %v375 = vunpack.c.l.s4 1966171168
  %v376 = vunpack.c.0.s8 %v375
  %v377 = vlaneseq
  %v378 = vshrl.u32 %v377, 7
  %v379 = vsub.s32 %v376, %v378
  %v380 = vrot.slane %v366, %v379
  %v381 = vlaneseq
  %v382 = vshrl.u32 %v381, 7
  %v383 = vsub.s32 0, %v382
  %v384 = vrot.slane %v373, %v383
  %v385 = vlaneseq
  %v386 = vshrl.u32 %v385, 7
  %v387 = vsub.s32 0, %v386
  %v388 = vrot.slane %v380, %v387
  %v391 = vmul.f32 %v352, %v384
  %v392 = vmul.f32 %v355, %v388
  %v393 = vlaneseq
  %v394 = vshrl.u32 %v393, 7
  %v395 = vadd.s32 %v394, 8
  %v396 = vadd.s32 %v394, 16
  %v397 = vadd.s32 %v394, 24
  %v398 = vlaneseq
  %v399 = vand.u32 %v398, 127
  %v400 = vmul.u32 %v399, 8
  %vm401 = vcmp.ge.s32.totalorder %v394, %v400
  %vm402 = vcmp.ge.s32.totalorder %v395, %v400
  %vm403 = vcmp.ge.s32.totalorder %v396, %v400
  %vm404 = vcmp.ge.s32.totalorder %v397, %v400
  %v405 = vadd.s32 %v400, 8
  %vm406 = vcmp.lt.s32.totalorder %v394, %v405
  %vm407 = vcmp.lt.s32.totalorder %v395, %v405
  %vm408 = vcmp.lt.s32.totalorder %v396, %v405
  %vm409 = vcmp.lt.s32.totalorder %v397, %v405
  %vm410 = vmand %vm401, %vm406
  %vm411 = vmand %vm402, %vm407
  %vm412 = vmand %vm403, %vm408
  %vm413 = vmand %vm404, %vm409
  %v414 = vsel %vm410, 1, 0
  %v415 = vsel %vm411, 1, 0
  %v416 = vsel %vm412, 1, 0
  %v417 = vsel %vm413, 1, 0
  %v418 = vcvt.s32.f32 %v414
  %v419 = vcvt.s32.f32 %v415
  %v420 = vcvt.s32.f32 %v416
  %v421 = vcvt.s32.f32 %v417
  %v423 = vsel %vm247, %v391, 0
  %v426 = vsel %vm247, %v392, 0
  %428 = vmatprep.subr.mxu0 0.0
  %429 = vmatpush1.msra.mxu0 %v418
  %430 = vmatprep.subr.mxu0 0.0
  %431 = vmatpush1.msra.mxu0 %v419
  %432 = vmatprep.subr.mxu0 0.0
  %433 = vmatpush1.msra.mxu0 %v420
  %434 = vmatprep.subr.mxu0 0.0
  %435 = vmatpush1.msra.mxu0 %v421
  %436 = vmatprep.subr.mxu0 0.0
  %437 = vmatpush1.msra.mxu0 0.0
  %438 = vmatprep.subr.mxu0 0.0
  %439 = vmatpush1.msra.mxu0 0.0
  %440 = vmatprep.subr.mxu0 0.0
  %441 = vmatpush1.msra.mxu0 0.0
  %442 = vmatprep.subr.mxu0 0.0
  %443 = vmatpush1.msra.mxu0 0.0
  %444 = vmatprep.subr.mxu0 0.0
  %445 = vmatpush1.msra.mxu0 0.0
  %446 = vmatprep.subr.mxu0 0.0
  %447 = vmatpush1.msra.mxu0 0.0
  %448 = vmatprep.subr.mxu0 0.0
  %449 = vmatpush1.msra.mxu0 0.0
  %450 = vmatprep.subr.mxu0 0.0
  %451 = vmatpush1.msra.mxu0 0.0
  %452 = vmatprep.subr.mxu0 0.0
  %453 = vmatpush1.msra.mxu0 0.0
  %454 = vmatprep.subr.mxu0 0.0
  %455 = vmatpush1.msra.mxu0 0.0
  %456 = vmatprep.subr.mxu0 0.0
  %457 = vmatpush1.msra.mxu0 0.0
  %458 = vmatprep.subr.mxu0 0.0
  %459 = vmatpush1.msra.mxu0 0.0
  %460 = vmatprep.subr.mxu0 0.0
  %461 = vmatpush1.msra.mxu0 0.0
  %462 = vmatprep.subr.mxu0 0.0
  %463 = vmatpush1.msra.mxu0 0.0
  %464 = vmatprep.subr.mxu0 0.0
  %465 = vmatpush1.msra.mxu0 0.0
  %466 = vmatprep.subr.mxu0 0.0
  %467 = vmatpush1.msra.mxu0 0.0
  %468 = vmatprep.subr.mxu0 0.0
  %469 = vmatpush1.msra.mxu0 0.0
  %470 = vmatprep.subr.mxu0 0.0
  %471 = vmatpush1.msra.mxu0 0.0
  %472 = vmatprep.subr.mxu0 0.0
  %473 = vmatpush1.msra.mxu0 0.0
  %474 = vmatprep.subr.mxu0 0.0
  %475 = vmatpush1.msra.mxu0 0.0
  %476 = vmatprep.subr.mxu0 0.0
  %477 = vmatpush1.msra.mxu0 0.0
  %478 = vmatprep.subr.mxu0 0.0
  %479 = vmatpush1.msra.mxu0 0.0
  %480 = vmatprep.subr.mxu0 0.0
  %481 = vmatpush1.msra.mxu0 0.0
  %482 = vmatprep.subr.mxu0 0.0
  %483 = vmatpush1.msra.mxu0 0.0
  %484 = vmatprep.subr.mxu0 0.0
  %485 = vmatpush1.msra.mxu0 0.0
  %486 = vmatprep.subr.mxu0 0.0
  %487 = vmatpush1.msra.mxu0 0.0
  %488 = vmatprep.subr.mxu0 0.0
  %489 = vmatpush1.msra.mxu0 0.0
  %490 = vmatprep.subr.mxu0 0.0
  %491 = vmatpush1.msra.mxu0 0.0
  %492 = vmatprep.mubr.f32.mxu0 0.0
  %493 = vmatmul.mubr.f32.gmra.mrb[0].mxu0 %v423
  %v494 = vpop.f32.mrb[0].mxu0
  %v495 = vadd.f32 0.0, %v494
  %v496 = vpop.f32.mrb[0].mxu0
  %497 = vmatprep.mubr.f32.mxu0 0.0
  %498 = vmatmul.mubr.f32.gmra.mrb[0].mxu0 %v426
  %v499 = vpop.f32.mrb[0].mxu0
  %v500 = vadd.f32 0.0, %v499
  %v501 = vpop.f32.mrb[0].mxu0
  %502 = vdwg.mxu0
  %vm503 = vcmask 31744
  %v504 = vsel %vm503, %v495, -inf
  %v505 = vrot.slane %v504, 4
  %v506 = vmax.f32 %v504, %v505
  %v507 = vrot.slane %v506, 2
  %v508 = vmax.f32 %v506, %v507
  %v509 = vrot.slane %v508, 1
  %v510 = vmax.f32 %v508, %v509
  %v511 = vsel %vm503, %v500, -inf
  %v512 = vrot.slane %v511, 4
  %v513 = vmax.f32 %v511, %v512
  %v514 = vrot.slane %v513, 2
  %v515 = vmax.f32 %v513, %v514
  %v516 = vrot.slane %v515, 1
  %v517 = vmax.f32 %v515, %v516
  %v518 = vsub.f32 %v495, %v510
  %v519 = vsub.f32 %v500, %v517
  %v520 = vmul.f32 %v518, 1.442695
  %v521 = vpow.pop %v520
  %v522 = vmul.f32 %v519, 1.442695
  %v523 = vpow.pop %v522
  %v524 = vsel %vm503, %v521, 0.0
  %v525 = vrot.slane %v524, 4
  %v526 = vadd.f32 %v524, %v525
  %v527 = vrot.slane %v526, 2
  %v528 = vadd.f32 %v526, %v527
  %v529 = vrot.slane %v528, 1
  %v530 = vadd.f32 %v528, %v529
  %v531 = vsel %vm503, %v523, 0.0
  %v532 = vrot.slane %v531, 4
  %v533 = vadd.f32 %v531, %v532
  %v534 = vrot.slane %v533, 2
  %v535 = vadd.f32 %v533, %v534
  %v536 = vrot.slane %v535, 1
  %v537 = vadd.f32 %v535, %v536
  %v538 = vrcp.pop %v530
  %v539 = vrcp.pop %v537
  %v540 = vmul.f32 %v521, %v538
  %v541 = vmul.f32 %v523, %v539
  %542 = vst.msk [vmem:[%s6] sm:$0xff] %vm503, %v540
  %543 = vst.msk [vmem:[%s6 + $0x8] sm:$0xff] %vm503, %v541
  // Predicated region
  $region26: #{tpu_custom_call.1} parent=0 // pred_check
    _
  $region27: #{tpu_custom_call.1} parent=0 // pred_check_branch
    %545 = sbr.rel (0) target = $region29
  $region28: #{tpu_custom_call.1} parent=0 // pred_region
    _
  $region29: #{tpu_custom_call.1} parent=0 // pred_fallthru
    _
  // Predicated region
  $region30: #{tpu_custom_call.1} parent=0 // pred_check
    _
  $region31: #{tpu_custom_call.1} parent=0 // pred_check_branch
    %547 = sbr.rel (0) target = $region33
  $region32: #{tpu_custom_call.1} parent=0 // pred_region
    _
  $region33: #{tpu_custom_call.1} parent=0 // pred_fallthru
    _

</llo_original>
